<compile_context>
chip_gen: v6e
topology: v6e:2x2x1
jax: 0.10.0
libtpu: 0.0.40
codegen_flags: <defaults>
</compile_context>

<pallas_src>
import jax
import jax.numpy as jnp
from jax.experimental import pallas as pl
from jax.experimental.pallas import tpu as pltpu


def mlp_kernel(x_ref, w1_ref, b1_ref, w2_ref, b2_ref, o_ref, acc_ref):
    """One (batch-tile, hidden-chunk) grid step of y = relu(x@w1+b1)@w2+b2."""
    j = pl.program_id(1)

    @pl.when(j == 0)
    def _init():
        acc_ref[...] = jnp.zeros_like(acc_ref)

    # f32 -> bf16 cast on the VPU (x streamed from HBM as unpadded f32).
    x_bf16 = x_ref[...].astype(jnp.bfloat16)

    # fc1 chunk: [tb, K] @ [K, th] -> f32 accumulation on the MXU.
    h = jnp.dot(x_bf16, w1_ref[...], preferred_element_type=jnp.float32)
    # Bias + ReLU in f32 on the VPU (exact per hidden chunk).
    h = jnp.maximum(h + b1_ref[...], 0.0)

    # fc2 chunk: accumulate [tb, th] @ [th, N] into the f32 scratch.
    acc_ref[...] += jnp.dot(h.astype(w2_ref.dtype), w2_ref[...],
                            preferred_element_type=jnp.float32)

    @pl.when(j == pl.num_programs(1) - 1)
    def _finalize():
        o_ref[...] = (acc_ref[...] + b2_ref[...]).astype(o_ref.dtype)


def _round_up(n, m):
    return ((n + m - 1) // m) * m


def _pad_to(a, axis, target):
    pad = target - a.shape[axis]
    if pad == 0:
        return a
    widths = [(0, 0)] * a.ndim
    widths[axis] = (0, pad)
    return jnp.pad(a, widths)


def prepare_params(w1, b1, w2, b2, *, hidden_chunk=512):
    """One-time conversion of the Linear parameters into kernel layout.

    Inputs are in [in, out] layout (transposed vs. nn.Linear.weight):
      w1: [in, hidden], b1: [1, hidden] or [hidden],
      w2: [hidden, out], b2: [1, out]  or [out].
    Returns bf16 weights / f32 biases with the hidden axis zero-padded to a
    multiple of the chosen hidden-chunk size (exact through matmul+bias+ReLU).
    """
    _, hidden = w1.shape
    out_size = w2.shape[1]
    b1 = jnp.reshape(b1, (1, hidden)).astype(jnp.float32)
    b2 = jnp.reshape(b2, (1, out_size)).astype(jnp.float32)

    # Single hidden chunk (padded to a lane multiple) for small/medium H;
    # otherwise chunk H to bound the live f32 activation and VMEM pressure.
    if hidden <= 2048:
        tile_h = _round_up(hidden, 128)
    else:
        tile_h = hidden_chunk  # must be a multiple of 128
    hp = _round_up(hidden, tile_h)

    return dict(
        w1=_pad_to(w1.astype(jnp.bfloat16), 1, hp),   # [K, Hp]
        b1=_pad_to(b1, 1, hp),                        # [1, Hp]
        w2=_pad_to(w2.astype(jnp.bfloat16), 0, hp),   # [Hp, N]
        b2=b2,                                        # [1, N]
        tile_h=tile_h,
    )


def _run_mlp(x, params, tile_b, single_buffer_weights):
    w1, b1, w2, b2 = params["w1"], params["b1"], params["w2"], params["b2"]
    tile_h = params["tile_h"]
    Bp, K = x.shape
    Hp = w1.shape[1]
    N = w2.shape[1]
    grid = (Bp // tile_b, Hp // tile_h)
    grid_h = grid[1]

    # Constant-index (fully resident) weights only need one VMEM buffer;
    # double-buffering them is wasted VMEM (matters under v7x's 64 MiB).
    resident = single_buffer_weights and grid_h == 1

    def wspec(shape, index_map):
        if resident:
            return pl.BlockSpec(shape, index_map, pipeline_mode=pl.Buffered(1))
        return pl.BlockSpec(shape, index_map)

    # VMEM budget: weights (+double buffer unless resident), streamed x/out
    # tiles (double-buffered), accumulator scratch and the live f32 activation.
    wbytes = (K * tile_h + tile_h * N) * 2 + (tile_h + N) * 4
    needed = (wbytes * (1 if resident else 2)
              + 2 * tile_b * K * 4
              + 2 * tile_b * N * 4
              + tile_b * N * 4
              + tile_b * tile_h * 4)
    vmem_limit = int(min(max(2 * needed, 32 * 1024 * 1024),
                         100 * 1024 * 1024))

    return pl.pallas_call(
        mlp_kernel,
        out_shape=jax.ShapeDtypeStruct((Bp, N), jnp.float32),
        grid_spec=pltpu.PrefetchScalarGridSpec(
            num_scalar_prefetch=0,
            grid=grid,
            in_specs=[
                # x: tiled along batch, full unpadded K; constant across the
                # hidden-chunk axis so it stays resident over j.
                pl.BlockSpec((tile_b, K), lambda i, j: (i, 0)),
                wspec((K, tile_h), lambda i, j: (0, j)),
                wspec((1, tile_h), lambda i, j: (0, j)),
                wspec((tile_h, N), lambda i, j: (j, 0)),
                wspec((1, N), lambda i, j: (0, 0)),
            ],
            out_specs=pl.BlockSpec((tile_b, N), lambda i, j: (i, 0)),
            scratch_shapes=[pltpu.VMEM((tile_b, N), jnp.float32)],
        ),
        compiler_params=pltpu.CompilerParams(
            # Batch tiles are independent -> shard across v7x's 2 TCs;
            # hidden-chunk axis is a reduction -> "arbitrary", kept last.
            dimension_semantics=("parallel", "arbitrary"),
            vmem_limit_bytes=vmem_limit,
        ),
    )(x, w1, b1, w2, b2)


_SINGLE_BUFFER_OK = True  # flipped off if this Pallas build rejects Buffered(1)


def neural_net_forward(x, params):
    """x: [B, in_features] (float32) -> [B, out_features] (float32)."""
    global _SINGLE_BUFFER_OK
    B, K = x.shape
    assert K == params["w1"].shape[0], "input feature size mismatch"

    # Batch tiling: one full-extent tile (no padding, no slicing) for small
    # batches; 256-row tiles (fills the 256-wide MXU on v6e/v7x, many
    # "parallel" tiles for megacore) for large batches.
    if B <= 256:
        tile_b = B
        xp = x
    else:
        tile_b = 256
        xp = _pad_to(x, 0, _round_up(B, tile_b))

    if _SINGLE_BUFFER_OK:
        try:
            out = _run_mlp(xp, params, tile_b, single_buffer_weights=True)
        except Exception:  # pl.Buffered(1) unsupported -> default buffering
            _SINGLE_BUFFER_OK = False
            out = _run_mlp(xp, params, tile_b, single_buffer_weights=False)
    else:
        out = _run_mlp(xp, params, tile_b, single_buffer_weights=False)

    if out.shape[0] != B:
        out = out[:B]
    return out


def reference_forward(x, w1, b1, w2, b2):
    h = jnp.maximum(x @ w1 + b1, 0.0)
    return h @ w2 + b2


if __name__ == "__main__":
    # Small shapes consistent with the module: Linear(in, hidden), Linear(hidden, out)
    batch, input_size, hidden_size, output_size = 8, 32, 64, 16

    key = jax.random.PRNGKey(0)
    kx, k1, k2, k3, k4 = jax.random.split(key, 5)

    x = jax.random.normal(kx, (batch, input_size), dtype=jnp.float32)

    # Deterministic parameter init (PyTorch-like uniform scaling), stored as
    # [in, out] for the kernel.
    bound1 = 1.0 / (input_size ** 0.5)
    w1 = jax.random.uniform(k1, (input_size, hidden_size), jnp.float32,
                            minval=-bound1, maxval=bound1)
    b1 = jax.random.uniform(k2, (1, hidden_size), jnp.float32,
                            minval=-bound1, maxval=bound1)

    bound2 = 1.0 / (hidden_size ** 0.5)
    w2 = jax.random.uniform(k3, (hidden_size, output_size), jnp.float32,
                            minval=-bound2, maxval=bound2)
    b2 = jax.random.uniform(k4, (1, output_size), jnp.float32,
                            minval=-bound2, maxval=bound2)

    # One-time parameter layout conversion (bf16, padded hidden axis).
    params = prepare_params(w1, b1, w2, b2)

    out = neural_net_forward(x, params)
    out = jax.block_until_ready(out)

    ref = reference_forward(x, w1, b1, w2, b2)
    assert out.shape == (batch, output_size)
    # bf16 MXU operands vs f32 reference -> loosened tolerance.
    assert jnp.allclose(out, ref, atol=3e-2, rtol=3e-2), "mismatch vs reference"

    print("KERNEL_OK")
</pallas_src>

<mosaic_0001>
module attributes {stable_mosaic.version = 11 : i64} {
  func.func @mlp_kernel(%arg0: i32, %arg1: i32, %arg2: memref<8x32xf32, #tpu.memory_space<vmem>>, %arg3: memref<32x128xbf16, #tpu.memory_space<vmem>>, %arg4: memref<1x128xf32, #tpu.memory_space<vmem>>, %arg5: memref<128x16xbf16, #tpu.memory_space<vmem>>, %arg6: memref<1x16xf32, #tpu.memory_space<vmem>>, %arg7: memref<8x16xf32, #tpu.memory_space<vmem>>, %arg8: memref<8x16xf32, #tpu.memory_space<vmem>>) attributes {dimension_semantics = [#tpu.dimension_semantics<parallel>, #tpu.dimension_semantics<arbitrary>], iteration_bounds = array<i64: 1, 1>, scalar_prefetch = 0 : i64, scratch_operands = 1 : i64, tpu.core_type = #tpu.core_type<tc>, window_params = [{transform_indices = @transform_0, window_bounds = array<i64: 8, 32>}, {pipeline_mode = #tpu.pipeline_mode<synchronous>, transform_indices = @transform_1, window_bounds = array<i64: 32, 128>}, {pipeline_mode = #tpu.pipeline_mode<synchronous>, transform_indices = @transform_2, window_bounds = array<i64: 1, 128>}, {pipeline_mode = #tpu.pipeline_mode<synchronous>, transform_indices = @transform_3, window_bounds = array<i64: 128, 16>}, {pipeline_mode = #tpu.pipeline_mode<synchronous>, transform_indices = @transform_4, window_bounds = array<i64: 1, 16>}, {transform_indices = @transform_5, window_bounds = array<i64: 8, 16>}]} {
    %c0_i32 = arith.constant 0 : i32
    %0 = arith.cmpi eq, %arg1, %c0_i32 : i32
    %1 = arith.extui %0 : i1 to i32
    %c0_i32_0 = arith.constant 0 : i32
    %2 = arith.cmpi ne, %1, %c0_i32_0 : i32
    scf.if %2 {
      %cst_16 = arith.constant 0.000000e+00 : f32
      %21 = vector.broadcast %cst_16 : f32 to vector<8x16xf32>
      %c0_17 = arith.constant 0 : index
      %c0_18 = arith.constant 0 : index
      %22 = vector.load %arg8[%c0_17, %c0_18] : memref<8x16xf32, #tpu.memory_space<vmem>>, vector<8x16xf32>
      tpu.vector_store %arg8[%c0_17, %c0_18], %21 {strides = array<i32>} : memref<8x16xf32, #tpu.memory_space<vmem>>, vector<8x16xf32>,
    } else {
    }
    %c0 = arith.constant 0 : index
    %c0_1 = arith.constant 0 : index
    %3 = vector.load %arg2[%c0, %c0_1] : memref<8x32xf32, #tpu.memory_space<vmem>>, vector<8x32xf32>
    %4 = arith.truncf %3 : vector<8x32xf32> to vector<8x32xbf16>
    %c0_2 = arith.constant 0 : index
    %c0_3 = arith.constant 0 : index
    %5 = vector.load %arg3[%c0_2, %c0_3] : memref<32x128xbf16, #tpu.memory_space<vmem>>, vector<32x128xbf16>
    %cst = arith.constant dense<0.000000e+00> : vector<8x128xf32>
    %6 = tpu.matmul %4, %5, %cst {dimension_numbers = #tpu.dot_dimension_numbers<[1], [0], [0], [1], [0, 0, 1, 1], [], []>} : vector<8x32xbf16>, vector<32x128xbf16>, vector<8x128xf32> -> vector<8x128xf32>
    %c0_4 = arith.constant 0 : index
    %c0_5 = arith.constant 0 : index
    %7 = vector.load %arg4[%c0_4, %c0_5] : memref<1x128xf32, #tpu.memory_space<vmem>>, vector<1x128xf32>
    %8 = vector.broadcast %7 : vector<1x128xf32> to vector<8x128xf32>
    %9 = arith.addf %6, %8 : vector<8x128xf32>
    %cst_6 = arith.constant 0.000000e+00 : f32
    %10 = vector.broadcast %cst_6 : f32 to vector<8x128xf32>
    %11 = arith.maximumf %9, %10 : vector<8x128xf32>
    %c0_7 = arith.constant 0 : index
    %c0_8 = arith.constant 0 : index
    %12 = vector.load %arg8[%c0_7, %c0_8] : memref<8x16xf32, #tpu.memory_space<vmem>>, vector<8x16xf32>
    %13 = arith.truncf %11 : vector<8x128xf32> to vector<8x128xbf16>
    %c0_9 = arith.constant 0 : index
    %c0_10 = arith.constant 0 : index
    %14 = vector.load %arg5[%c0_9, %c0_10] : memref<128x16xbf16, #tpu.memory_space<vmem>>, vector<128x16xbf16>
    %cst_11 = arith.constant dense<0.000000e+00> : vector<8x16xf32>
    %15 = tpu.matmul %13, %14, %cst_11 {dimension_numbers = #tpu.dot_dimension_numbers<[1], [0], [0], [1], [0, 0, 1, 1], [], []>} : vector<8x128xbf16>, vector<128x16xbf16>, vector<8x16xf32> -> vector<8x16xf32>
    %16 = arith.addf %12, %15 : vector<8x16xf32>
    %c0_12 = arith.constant 0 : index
    %c0_13 = arith.constant 0 : index
    %17 = vector.load %arg8[%c0_12, %c0_13] : memref<8x16xf32, #tpu.memory_space<vmem>>, vector<8x16xf32>
    tpu.vector_store %arg8[%c0_12, %c0_13], %16 {strides = array<i32>} : memref<8x16xf32, #tpu.memory_space<vmem>>, vector<8x16xf32>,
    %c0_i32_14 = arith.constant 0 : i32
    %18 = arith.cmpi eq, %arg1, %c0_i32_14 : i32
    %19 = arith.extui %18 : i1 to i32
    %c0_i32_15 = arith.constant 0 : i32
    %20 = arith.cmpi ne, %19, %c0_i32_15 : i32
    scf.if %20 {
      %c0_16 = arith.constant 0 : index
      %c0_17 = arith.constant 0 : index
      %21 = vector.load %arg8[%c0_16, %c0_17] : memref<8x16xf32, #tpu.memory_space<vmem>>, vector<8x16xf32>
      %c0_18 = arith.constant 0 : index
      %c0_19 = arith.constant 0 : index
      %22 = vector.load %arg6[%c0_18, %c0_19] : memref<1x16xf32, #tpu.memory_space<vmem>>, vector<1x16xf32>
      %23 = vector.broadcast %22 : vector<1x16xf32> to vector<8x16xf32>
      %24 = arith.addf %21, %23 : vector<8x16xf32>
      %c0_20 = arith.constant 0 : index
      %c0_21 = arith.constant 0 : index
      %25 = vector.load %arg7[%c0_20, %c0_21] : memref<8x16xf32, #tpu.memory_space<vmem>>, vector<8x16xf32>
      tpu.vector_store %arg7[%c0_20, %c0_21], %24 {strides = array<i32>} : memref<8x16xf32, #tpu.memory_space<vmem>>, vector<8x16xf32>,
    } else {
    }
    return
  }
  func.func @transform_0(%arg0: i32, %arg1: i32) -> (i32, i32) {
    %c0_i32 = arith.constant 0 : i32
    %c0_i32_0 = arith.constant 0 : i32
    return %arg0, %c0_i32 : i32, i32
  }
  func.func @transform_1(%arg0: i32, %arg1: i32) -> (i32, i32) {
    %c0_i32 = arith.constant 0 : i32
    %c0_i32_0 = arith.constant 0 : i32
    return %c0_i32, %arg1 : i32, i32
  }
  func.func @transform_2(%arg0: i32, %arg1: i32) -> (i32, i32) {
    %c0_i32 = arith.constant 0 : i32
    %c0_i32_0 = arith.constant 0 : i32
    return %c0_i32, %arg1 : i32, i32
  }
  func.func @transform_3(%arg0: i32, %arg1: i32) -> (i32, i32) {
    %c0_i32 = arith.constant 0 : i32
    %c0_i32_0 = arith.constant 0 : i32
    return %arg1, %c0_i32 : i32, i32
  }
  func.func @transform_4(%arg0: i32, %arg1: i32) -> (i32, i32) {
    %c0_i32 = arith.constant 0 : i32
    %c0_i32_0 = arith.constant 0 : i32
    %c0_i32_1 = arith.constant 0 : i32
    return %c0_i32, %c0_i32_0 : i32, i32
  }
  func.func @transform_5(%arg0: i32, %arg1: i32) -> (i32, i32) {
    %c0_i32 = arith.constant 0 : i32
    %c0_i32_0 = arith.constant 0 : i32
    return %arg0, %c0_i32 : i32, i32
  }
}

module attributes {stable_mosaic.version = 11 : i64} {
  func.func @mlp_kernel(%arg0: i32, %arg1: i32, %arg2: memref<8x32xf32, #tpu.memory_space<vmem>>, %arg3: memref<32x128xbf16, #tpu.memory_space<vmem>>, %arg4: memref<1x128xf32, #tpu.memory_space<vmem>>, %arg5: memref<128x16xbf16, #tpu.memory_space<vmem>>, %arg6: memref<1x16xf32, #tpu.memory_space<vmem>>, %arg7: memref<8x16xf32, #tpu.memory_space<vmem>>, %arg8: memref<8x16xf32, #tpu.memory_space<vmem>>) attributes {dimension_semantics = [#tpu.dimension_semantics<parallel>, #tpu.dimension_semantics<arbitrary>], iteration_bounds = array<i64: 1, 1>, scalar_prefetch = 0 : i64, scratch_operands = 1 : i64, tpu.core_type = #tpu.core_type<tc>, window_params = [{transform_indices = @transform_0, window_bounds = array<i64: 8, 32>}, {transform_indices = @transform_1, window_bounds = array<i64: 32, 128>}, {transform_indices = @transform_2, window_bounds = array<i64: 1, 128>}, {transform_indices = @transform_3, window_bounds = array<i64: 128, 16>}, {pipeline_mode = #tpu.pipeline_mode<synchronous>, transform_indices = @transform_4, window_bounds = array<i64: 1, 16>}, {transform_indices = @transform_5, window_bounds = array<i64: 8, 16>}]} {
    %c0_i32 = arith.constant 0 : i32
    %0 = arith.cmpi eq, %arg1, %c0_i32 : i32
    %1 = arith.extui %0 : i1 to i32
    %c0_i32_0 = arith.constant 0 : i32
    %2 = arith.cmpi ne, %1, %c0_i32_0 : i32
    scf.if %2 {
      %cst_16 = arith.constant 0.000000e+00 : f32
      %21 = vector.broadcast %cst_16 : f32 to vector<8x16xf32>
      %c0_17 = arith.constant 0 : index
      %c0_18 = arith.constant 0 : index
      %22 = vector.load %arg8[%c0_17, %c0_18] : memref<8x16xf32, #tpu.memory_space<vmem>>, vector<8x16xf32>
      tpu.vector_store %arg8[%c0_17, %c0_18], %21 {strides = array<i32>} : memref<8x16xf32, #tpu.memory_space<vmem>>, vector<8x16xf32>,
    } else {
    }
    %c0 = arith.constant 0 : index
    %c0_1 = arith.constant 0 : index
    %3 = vector.load %arg2[%c0, %c0_1] : memref<8x32xf32, #tpu.memory_space<vmem>>, vector<8x32xf32>
    %4 = arith.truncf %3 : vector<8x32xf32> to vector<8x32xbf16>
    %c0_2 = arith.constant 0 : index
    %c0_3 = arith.constant 0 : index
    %5 = vector.load %arg3[%c0_2, %c0_3] : memref<32x128xbf16, #tpu.memory_space<vmem>>, vector<32x128xbf16>
    %cst = arith.constant dense<0.000000e+00> : vector<8x128xf32>
    %6 = tpu.matmul %4, %5, %cst {dimension_numbers = #tpu.dot_dimension_numbers<[1], [0], [0], [1], [0, 0, 1, 1], [], []>} : vector<8x32xbf16>, vector<32x128xbf16>, vector<8x128xf32> -> vector<8x128xf32>
    %c0_4 = arith.constant 0 : index
    %c0_5 = arith.constant 0 : index
    %7 = vector.load %arg4[%c0_4, %c0_5] : memref<1x128xf32, #tpu.memory_space<vmem>>, vector<1x128xf32>
    %8 = vector.broadcast %7 : vector<1x128xf32> to vector<8x128xf32>
    %9 = arith.addf %6, %8 : vector<8x128xf32>
    %cst_6 = arith.constant 0.000000e+00 : f32
    %10 = vector.broadcast %cst_6 : f32 to vector<8x128xf32>
    %11 = arith.maximumf %9, %10 : vector<8x128xf32>
    %c0_7 = arith.constant 0 : index
    %c0_8 = arith.constant 0 : index
    %12 = vector.load %arg8[%c0_7, %c0_8] : memref<8x16xf32, #tpu.memory_space<vmem>>, vector<8x16xf32>
    %13 = arith.truncf %11 : vector<8x128xf32> to vector<8x128xbf16>
    %c0_9 = arith.constant 0 : index
    %c0_10 = arith.constant 0 : index
    %14 = vector.load %arg5[%c0_9, %c0_10] : memref<128x16xbf16, #tpu.memory_space<vmem>>, vector<128x16xbf16>
    %cst_11 = arith.constant dense<0.000000e+00> : vector<8x16xf32>
    %15 = tpu.matmul %13, %14, %cst_11 {dimension_numbers = #tpu.dot_dimension_numbers<[1], [0], [0], [1], [0, 0, 1, 1], [], []>} : vector<8x128xbf16>, vector<128x16xbf16>, vector<8x16xf32> -> vector<8x16xf32>
    %16 = arith.addf %12, %15 : vector<8x16xf32>
    %c0_12 = arith.constant 0 : index
    %c0_13 = arith.constant 0 : index
    %17 = vector.load %arg8[%c0_12, %c0_13] : memref<8x16xf32, #tpu.memory_space<vmem>>, vector<8x16xf32>
    tpu.vector_store %arg8[%c0_12, %c0_13], %16 {strides = array<i32>} : memref<8x16xf32, #tpu.memory_space<vmem>>, vector<8x16xf32>,
    %c0_i32_14 = arith.constant 0 : i32
    %18 = arith.cmpi eq, %arg1, %c0_i32_14 : i32
    %19 = arith.extui %18 : i1 to i32
    %c0_i32_15 = arith.constant 0 : i32
    %20 = arith.cmpi ne, %19, %c0_i32_15 : i32
    scf.if %20 {
      %c0_16 = arith.constant 0 : index
      %c0_17 = arith.constant 0 : index
      %21 = vector.load %arg8[%c0_16, %c0_17] : memref<8x16xf32, #tpu.memory_space<vmem>>, vector<8x16xf32>
      %c0_18 = arith.constant 0 : index
      %c0_19 = arith.constant 0 : index
      %22 = vector.load %arg6[%c0_18, %c0_19] : memref<1x16xf32, #tpu.memory_space<vmem>>, vector<1x16xf32>
      %23 = vector.broadcast %22 : vector<1x16xf32> to vector<8x16xf32>
      %24 = arith.addf %21, %23 : vector<8x16xf32>
      %c0_20 = arith.constant 0 : index
      %c0_21 = arith.constant 0 : index
      %25 = vector.load %arg7[%c0_20, %c0_21] : memref<8x16xf32, #tpu.memory_space<vmem>>, vector<8x16xf32>
      tpu.vector_store %arg7[%c0_20, %c0_21], %24 {strides = array<i32>} : memref<8x16xf32, #tpu.memory_space<vmem>>, vector<8x16xf32>,
    } else {
    }
    return
  }
  func.func @transform_0(%arg0: i32, %arg1: i32) -> (i32, i32) {
    %c0_i32 = arith.constant 0 : i32
    %c0_i32_0 = arith.constant 0 : i32
    return %arg0, %c0_i32 : i32, i32
  }
  func.func @transform_1(%arg0: i32, %arg1: i32) -> (i32, i32) {
    %c0_i32 = arith.constant 0 : i32
    %c0_i32_0 = arith.constant 0 : i32
    return %c0_i32, %arg1 : i32, i32
  }
  func.func @transform_2(%arg0: i32, %arg1: i32) -> (i32, i32) {
    %c0_i32 = arith.constant 0 : i32
    %c0_i32_0 = arith.constant 0 : i32
    return %c0_i32, %arg1 : i32, i32
  }
  func.func @transform_3(%arg0: i32, %arg1: i32) -> (i32, i32) {
    %c0_i32 = arith.constant 0 : i32
    %c0_i32_0 = arith.constant 0 : i32
    return %arg1, %c0_i32 : i32, i32
  }
  func.func @transform_4(%arg0: i32, %arg1: i32) -> (i32, i32) {
    %c0_i32 = arith.constant 0 : i32
    %c0_i32_0 = arith.constant 0 : i32
    %c0_i32_1 = arith.constant 0 : i32
    return %c0_i32, %c0_i32_0 : i32, i32
  }
  func.func @transform_5(%arg0: i32, %arg1: i32) -> (i32, i32) {
    %c0_i32 = arith.constant 0 : i32
    %c0_i32_0 = arith.constant 0 : i32
    return %arg0, %c0_i32 : i32, i32
  }
}

</mosaic_0001>

<llo_original>
// kernel: tpu_custom_call.1
$region0: #{tpu_custom_call.1}
  #allocation0 [shape = 'u32[]', space=smem, size = 0x4, offset = 0x4, fixed_abs, tag = 'smem constant byte address 0x4 - core index']
  #allocation1 [shape = 'u32[144,128]{1,0:T(1,128)}', space=vmem, size = 0x12000, scoped, tag = 'internal scratch']
  #allocation2 [shape = 'f32[8,16]{1,0:T(8,128)}', space=vmem, size = 0x1000, scoped, tag = 'scratch operand']
  %s0 = inlined_call_operand.vmem [shape: f32[8,32], index: 0, kind: input, shape index: {}]
  %s1 = inlined_call_operand.vmem [shape: bf16[32,128], index: 1, kind: input, shape index: {}]
  %s2 = inlined_call_operand.vmem [shape: f32[1,128], index: 2, kind: input, shape index: {}]
  %s3 = inlined_call_operand.vmem [shape: bf16[128,16], index: 3, kind: input, shape index: {}]
  %s4 = inlined_call_operand.vmem [shape: f32[1,16], index: 4, kind: input, shape index: {}]
  %s5 = inlined_call_operand.hbm [shape: f32[8,16], index: 5, kind: output, shape index: {}]
  %s6 = sld [smem:[#allocation0]]
  $region38: #{tpu_custom_call.1} parent=0
    _
  %s8 = ssub.s32 1, %s6
  %s9 = scalar_select 0, %s8, %s6
  $region1: #{tpu_custom_call.1} parent=0
    #allocation3 [shape = 'u8[4096]{0}', space=vmem, size = 0x1000, scoped, tag = 'output window, operand 0, single buffered']
    #allocation4 [shape = 's32[1]{0}', space=sflag, size = 0x4, scoped, tag = 'scoped memory for tpu_custom_call.1']
    %10 = vsyncpa [#allocation4], 0
    // Predicated region
    $region2: #{tpu_custom_call.1} parent=1 // pred_check
      _
    $region3: #{tpu_custom_call.1} parent=1 // pred_check_branch
      %12 = sbr.rel (0) target = $region5
    $region4: #{tpu_custom_call.1} parent=1 // pred_region
      _
    $region5: #{tpu_custom_call.1} parent=1 // pred_fallthru
      _
    // Predicated region
    $region6: #{tpu_custom_call.1} parent=1 // pred_check
      _
    $region7: #{tpu_custom_call.1} parent=1 // pred_check_branch
      %14 = sbr.rel (0) target = $region9
    $region8: #{tpu_custom_call.1} parent=1 // pred_region
      _
    $region9: #{tpu_custom_call.1} parent=1 // pred_fallthru
      _
    // Predicated region
    $region10: #{tpu_custom_call.1} parent=1 // pred_check
      _
    $region11: #{tpu_custom_call.1} parent=1 // pred_check_branch
      %16 = sbr.rel (0) target = $region13
    $region12: #{tpu_custom_call.1} parent=1 // pred_region
      _
    $region13: #{tpu_custom_call.1} parent=1 // pred_fallthru
      _
    // Predicated region
    $region14: #{tpu_custom_call.1} parent=1 // pred_check
      _
    $region15: #{tpu_custom_call.1} parent=1 // pred_check_branch
      %18 = sbr.rel (0) target = $region17
    $region16: #{tpu_custom_call.1} parent=1 // pred_region
      _
    $region17: #{tpu_custom_call.1} parent=1 // pred_fallthru
      _
    // Predicated region
    $region18: #{tpu_custom_call.1} parent=1 // pred_check
      _
    $region19: #{tpu_custom_call.1} parent=1 // pred_check_branch
      %20 = sbr.rel (0) target = $region21
    $region20: #{tpu_custom_call.1} parent=1 // pred_region
      _
    $region21: #{tpu_custom_call.1} parent=1 // pred_fallthru
      _
    %p22 = scmp.eq.s32.totalorder 0, 0
    // Predicated region
    $region22: #{tpu_custom_call.1} parent=1 // pred_check
      %p23 = pneg %p22
    $region23: #{tpu_custom_call.1} parent=1 // pred_check_branch
      %25 = sbr.rel (%p23) target = $region25
    $region24: #{tpu_custom_call.1} parent=1 // pred_region
      %vm26 = vcmask 130048
      %27 = vst.msk [vmem:[#allocation2] sm:$0xff] %vm26, 0.0
    $region25: #{tpu_custom_call.1} parent=1 // pred_fallthru
      _
    %v28 = vld [vmem:[%s0] sm:$0xff]
    %v29 = vpack.c.bf16 %v28, %v28
    %v30 = vld [vmem:[%s1] sm:$0xf]
    %v31 = vld [vmem:[%s1 + $0x4] sm:$0xf]
    %v32 = vld [vmem:[%s1 + $0x8] sm:$0xf]
    %v33 = vld [vmem:[%s1 + $0xc] sm:$0xf]
    %v34 = vld [vmem:[%s2] sm:$0x1]
    %v36 = vlaneseq
    %v37 = vshrl.u32 %v36, 7
    %v38 = vsub.s32 0, %v37
    %v39 = vrot.slane %v34, %v38
    %v45 = vunpack.c.l.b16 %v30
    %v46 = vunpack.c.l.b16 %v31
    %v47 = vunpack.c.l.b16 %v32
    %v48 = vunpack.c.l.b16 %v33
    %v49 = vpack.c.b16 %v46, %v45
    %v50 = vpack.c.b16 %v48, %v47
    %vm53 = vcmask 261120
    %v55 = vsel %vm53, %v29, 0
    %57 = vmatprep.subr.bf16.mxu0 0
    %58 = vmatpush1.bf16.msra.mxu0 0
    %59 = vmatprep.subr.bf16.mxu0 0
    %60 = vmatpush1.bf16.msra.mxu0 0
    %61 = vmatprep.subr.bf16.mxu0 0
    %62 = vmatpush1.bf16.msra.mxu0 0
    %63 = vmatprep.subr.bf16.mxu0 0
    %64 = vmatpush1.bf16.msra.mxu0 0
    %65 = vmatprep.subr.bf16.mxu0 0
    %66 = vmatpush1.bf16.msra.mxu0 0
    %67 = vmatprep.subr.bf16.mxu0 0
    %68 = vmatpush1.bf16.msra.mxu0 0
    %69 = vmatprep.subr.bf16.mxu0 0
    %70 = vmatpush1.bf16.msra.mxu0 %v50
    %71 = vmatprep.subr.bf16.mxu0 0
    %72 = vmatpush1.bf16.msra.mxu0 %v49
    %73 = vmatprep.subr.bf16.mxu0 0
    %74 = vmatpush2.bf16.msra.mxu0 0
    %75 = vmatprep.subr.bf16.mxu0 0
    %76 = vmatpush2.bf16.msra.mxu0 0
    %77 = vmatprep.subr.bf16.mxu0 0
    %78 = vmatpush2.bf16.msra.mxu0 0
    %79 = vmatprep.subr.bf16.mxu0 0
    %80 = vmatpush2.bf16.msra.mxu0 0
    %81 = vmatprep.subr.bf16.mxu0 0
    %82 = vmatpush2.bf16.msra.mxu0 0
    %83 = vmatprep.subr.bf16.mxu0 0
    %84 = vmatpush2.bf16.msra.mxu0 0
    %85 = vmatprep.subr.bf16.mxu0 0
    %86 = vmatpush2.bf16.msra.mxu0 0
    %87 = vmatprep.subr.bf16.mxu0 0
    %88 = vmatpush2.bf16.msra.mxu0 0
    %89 = vmatprep.mubr.bf16.mxu0 0
    %90 = vmatmul.mubr.bf16.gmra.mxu0 %v55
    %v91 = vpop.f32.mrf.mxu0
    %v92 = vadd.f32 %v39, %v91
    %v93 = vpop.f32.mrf.mxu0
    %v94 = vpop.f32.mrf.mxu0
    %v95 = vpop.f32.mrf.mxu0
    %96 = vdwg.mxu0
    %v97 = vmax.f32 %v92, 0.0
    %v98 = vld [vmem:[#allocation2] sm:$0xff]
    %v99 = vpack.c.bf16 %v97, %v97
    %v100 = vld [vmem:[%s3] sm:$0xf]
    %v101 = vld [vmem:[%s3 + $0x4] sm:$0xf]
    %v102 = vld [vmem:[%s3 + $0x8] sm:$0xf]
    %v103 = vld [vmem:[%s3 + $0xc] sm:$0xf]
    %v104 = vld [vmem:[%s3 + $0x10] sm:$0xf]
    %v105 = vld [vmem:[%s3 + $0x14] sm:$0xf]
    %v106 = vld [vmem:[%s3 + $0x18] sm:$0xf]
    %v107 = vld [vmem:[%s3 + $0x1c] sm:$0xf]
    %v108 = vld [vmem:[%s3 + $0x20] sm:$0xf]
    %v109 = vld [vmem:[%s3 + $0x24] sm:$0xf]
    %v110 = vld [vmem:[%s3 + $0x28] sm:$0xf]
    %v111 = vld [vmem:[%s3 + $0x2c] sm:$0xf]
    %v112 = vld [vmem:[%s3 + $0x30] sm:$0xf]
    %v113 = vld [vmem:[%s3 + $0x34] sm:$0xf]
    %v114 = vld [vmem:[%s3 + $0x38] sm:$0xf]
    %v115 = vld [vmem:[%s3 + $0x3c] sm:$0xf]
    %v132 = vunpack.c.l.b16 %v100
    %v133 = vunpack.c.l.b16 %v101
    %v134 = vunpack.c.l.b16 %v102
    %v135 = vunpack.c.l.b16 %v103
    %v136 = vunpack.c.l.b16 %v104
    %v137 = vunpack.c.l.b16 %v105
    %v138 = vunpack.c.l.b16 %v106
    %v139 = vunpack.c.l.b16 %v107
    %v140 = vunpack.c.l.b16 %v108
    %v141 = vunpack.c.l.b16 %v109
    %v142 = vunpack.c.l.b16 %v110
    %v143 = vunpack.c.l.b16 %v111
    %v144 = vunpack.c.l.b16 %v112
    %v145 = vunpack.c.l.b16 %v113
    %v146 = vunpack.c.l.b16 %v114
    %v147 = vunpack.c.l.b16 %v115
    %v148 = vpack.c.b16 %v133, %v132
    %v149 = vpack.c.b16 %v135, %v134
    %v150 = vpack.c.b16 %v137, %v136
    %v151 = vpack.c.b16 %v139, %v138
    %v152 = vpack.c.b16 %v141, %v140
    %v153 = vpack.c.b16 %v143, %v142
    %v154 = vpack.c.b16 %v145, %v144
    %v155 = vpack.c.b16 %v147, %v146
    %164 = vmatprep.subr.bf16.mxu0 0
    %165 = vmatpush1.bf16.msra.mxu0 %v155
    %166 = vmatprep.subr.bf16.mxu0 0
    %167 = vmatpush1.bf16.msra.mxu0 %v154
    %168 = vmatprep.subr.bf16.mxu0 0
    %169 = vmatpush1.bf16.msra.mxu0 %v153
    %170 = vmatprep.subr.bf16.mxu0 0
    %171 = vmatpush1.bf16.msra.mxu0 %v152
    %172 = vmatprep.subr.bf16.mxu0 0
    %173 = vmatpush1.bf16.msra.mxu0 %v151
    %174 = vmatprep.subr.bf16.mxu0 0
    %175 = vmatpush1.bf16.msra.mxu0 %v150
    %176 = vmatprep.subr.bf16.mxu0 0
    %177 = vmatpush1.bf16.msra.mxu0 %v149
    %178 = vmatprep.subr.bf16.mxu0 0
    %179 = vmatpush1.bf16.msra.mxu0 %v148
    %180 = vmatprep.subr.bf16.mxu0 0
    %181 = vmatpush2.bf16.msra.mxu0 0
    %182 = vmatprep.subr.bf16.mxu0 0
    %183 = vmatpush2.bf16.msra.mxu0 0
    %184 = vmatprep.subr.bf16.mxu0 0
    %185 = vmatpush2.bf16.msra.mxu0 0
    %186 = vmatprep.subr.bf16.mxu0 0
    %187 = vmatpush2.bf16.msra.mxu0 0
    %188 = vmatprep.subr.bf16.mxu0 0
    %189 = vmatpush2.bf16.msra.mxu0 0
    %190 = vmatprep.subr.bf16.mxu0 0
    %191 = vmatpush2.bf16.msra.mxu0 0
    %192 = vmatprep.subr.bf16.mxu0 0
    %193 = vmatpush2.bf16.msra.mxu0 0
    %194 = vmatprep.subr.bf16.mxu0 0
    %195 = vmatpush2.bf16.msra.mxu0 0
    %196 = vmatprep.mubr.bf16.mxu0 0
    %197 = vmatmul.mubr.bf16.gmra.mxu0 %v99
    %v198 = vpop.f32.mrf.mxu0
    %v199 = vadd.f32 0.0, %v198
    %v200 = vpop.f32.mrf.mxu0
    %v201 = vpop.f32.mrf.mxu0
    %v202 = vpop.f32.mrf.mxu0
    %203 = vdwg.mxu0
    %v204 = vadd.f32 %v98, %v199
    %vm205 = vcmask 130048
    %206 = vst.msk [vmem:[#allocation2] sm:$0xff] %vm205, %v204
    // Predicated region
    $region26: #{tpu_custom_call.1} parent=1 // pred_check
      %p207 = pneg %p22
    $region27: #{tpu_custom_call.1} parent=1 // pred_check_branch
      %209 = sbr.rel (%p207) target = $region29
    $region28: #{tpu_custom_call.1} parent=1 // pred_region
      %v210 = vld [vmem:[#allocation2] sm:$0xff]
      %v211 = vld [vmem:[%s4] sm:$0x1]
      %v213 = vlaneseq
      %v214 = vshrl.u32 %v213, 7
      %v215 = vsub.s32 0, %v214
      %v216 = vrot.slane %v211, %v215
      %v218 = vadd.f32 %v210, %v216
      %219 = vst.msk [vmem:[#allocation3] sm:$0xff] %vm205, %v218
    $region29: #{tpu_custom_call.1} parent=1 // pred_fallthru
      _
    // Predicated region
    $region30: #{tpu_custom_call.1} parent=1 // pred_check
      _
    $region31: #{tpu_custom_call.1} parent=1 // pred_check_branch
      %221 = sbr.rel (0) target = $region33
    $region32: #{tpu_custom_call.1} parent=1 // pred_region
      %s223 = ssub.s32 128, 128
      %224 = vsyncadd [#allocation4], %s223
      %s226 = sshll.u32 [#allocation3], 4
      %s227 = int_to_ptr.vmem [resolvable:$true] %s226
      %229 = dma.vmem_to_hbm [thread:$0]  %s227, 128, %s5, [#allocation4]
    $region33: #{tpu_custom_call.1} parent=1 // pred_fallthru
      _
    // Predicated region
    $region34: #{tpu_custom_call.1} parent=1 // pred_check
      _
    $region35: #{tpu_custom_call.1} parent=1 // pred_check_branch
      %231 = sbr.rel (0) target = $region37
    $region36: #{tpu_custom_call.1} parent=1 // pred_region
      %232 = dma.done [#allocation4], 128
    $region37: #{tpu_custom_call.1} parent=1 // pred_fallthru
      _
    %233 = vsyncpa [#allocation4], 1

// kernel: tpu_custom_call.1
$region0: #{tpu_custom_call.1}
  #allocation0 [shape = 'u32[]', space=smem, size = 0x4, offset = 0x4, fixed_abs, tag = 'smem constant byte address 0x4 - core index']
  #allocation1 [shape = 'u32[144,128]{1,0:T(1,128)}', space=vmem, size = 0x12000, scoped, tag = 'internal scratch']
  #allocation2 [shape = 'f32[8,16]{1,0:T(8,128)}', space=vmem, size = 0x1000, scoped, tag = 'scratch operand']
  %s0 = inlined_call_operand.vmem [shape: f32[8,32], index: 0, kind: input, shape index: {}]
  %s1 = inlined_call_operand.vmem [shape: bf16[32,128], index: 1, kind: input, shape index: {}]
  %s2 = inlined_call_operand.vmem [shape: f32[1,128], index: 2, kind: input, shape index: {}]
  %s3 = inlined_call_operand.vmem [shape: bf16[128,16], index: 3, kind: input, shape index: {}]
  %s4 = inlined_call_operand.vmem [shape: f32[1,16], index: 4, kind: input, shape index: {}]
  %s5 = inlined_call_operand.hbm [shape: f32[8,16], index: 5, kind: output, shape index: {}]
  %s6 = sld [smem:[#allocation0]]
  $region38: #{tpu_custom_call.1} parent=0
    _
  %s8 = ssub.s32 1, %s6
  %s9 = scalar_select 0, %s8, %s6
  $region1: #{tpu_custom_call.1} parent=0
    #allocation3 [shape = 'u8[4096]{0}', space=vmem, size = 0x1000, scoped, tag = 'output window, operand 0, single buffered']
    #allocation4 [shape = 's32[1]{0}', space=sflag, size = 0x4, scoped, tag = 'scoped memory for tpu_custom_call.1']
    %10 = vsyncpa [#allocation4], 0
    // Predicated region
    $region2: #{tpu_custom_call.1} parent=1 // pred_check
      _
    $region3: #{tpu_custom_call.1} parent=1 // pred_check_branch
      %12 = sbr.rel (0) target = $region5
    $region4: #{tpu_custom_call.1} parent=1 // pred_region
      _
    $region5: #{tpu_custom_call.1} parent=1 // pred_fallthru
      _
    // Predicated region
    $region6: #{tpu_custom_call.1} parent=1 // pred_check
      _
    $region7: #{tpu_custom_call.1} parent=1 // pred_check_branch
      %14 = sbr.rel (0) target = $region9
    $region8: #{tpu_custom_call.1} parent=1 // pred_region
      _
    $region9: #{tpu_custom_call.1} parent=1 // pred_fallthru
      _
    // Predicated region
    $region10: #{tpu_custom_call.1} parent=1 // pred_check
      _
    $region11: #{tpu_custom_call.1} parent=1 // pred_check_branch
      %16 = sbr.rel (0) target = $region13
    $region12: #{tpu_custom_call.1} parent=1 // pred_region
      _
    $region13: #{tpu_custom_call.1} parent=1 // pred_fallthru
      _
    // Predicated region
    $region14: #{tpu_custom_call.1} parent=1 // pred_check
      _
    $region15: #{tpu_custom_call.1} parent=1 // pred_check_branch
      %18 = sbr.rel (0) target = $region17
    $region16: #{tpu_custom_call.1} parent=1 // pred_region
      _
    $region17: #{tpu_custom_call.1} parent=1 // pred_fallthru
      _
    // Predicated region
    $region18: #{tpu_custom_call.1} parent=1 // pred_check
      _
    $region19: #{tpu_custom_call.1} parent=1 // pred_check_branch
      %20 = sbr.rel (0) target = $region21
    $region20: #{tpu_custom_call.1} parent=1 // pred_region
      _
    $region21: #{tpu_custom_call.1} parent=1 // pred_fallthru
      _
    %p22 = scmp.eq.s32.totalorder 0, 0
    // Predicated region
    $region22: #{tpu_custom_call.1} parent=1 // pred_check
      %p23 = pneg %p22
    $region23: #{tpu_custom_call.1} parent=1 // pred_check_branch
      %25 = sbr.rel (%p23) target = $region25
    $region24: #{tpu_custom_call.1} parent=1 // pred_region
      %vm26 = vcmask 130048
      %27 = vst.msk [vmem:[#allocation2] sm:$0xff] %vm26, 0.0
    $region25: #{tpu_custom_call.1} parent=1 // pred_fallthru
      _
    %v28 = vld [vmem:[%s0] sm:$0xff]
    %v29 = vpack.c.bf16 %v28, %v28
    %v30 = vld [vmem:[%s1] sm:$0xf]
    %v31 = vld [vmem:[%s1 + $0x4] sm:$0xf]
    %v32 = vld [vmem:[%s1 + $0x8] sm:$0xf]
    %v33 = vld [vmem:[%s1 + $0xc] sm:$0xf]
    %v34 = vld [vmem:[%s2] sm:$0x1]
    %v36 = vlaneseq
    %v37 = vshrl.u32 %v36, 7
    %v38 = vsub.s32 0, %v37
    %v39 = vrot.slane %v34, %v38
    %v45 = vunpack.c.l.b16 %v30
    %v46 = vunpack.c.l.b16 %v31
    %v47 = vunpack.c.l.b16 %v32
    %v48 = vunpack.c.l.b16 %v33
    %v49 = vpack.c.b16 %v46, %v45
    %v50 = vpack.c.b16 %v48, %v47
    %vm53 = vcmask 261120
    %v55 = vsel %vm53, %v29, 0
    %57 = vmatprep.subr.bf16.mxu0 0
    %58 = vmatpush1.bf16.msra.mxu0 0
    %59 = vmatprep.subr.bf16.mxu0 0
    %60 = vmatpush1.bf16.msra.mxu0 0
    %61 = vmatprep.subr.bf16.mxu0 0
    %62 = vmatpush1.bf16.msra.mxu0 0
    %63 = vmatprep.subr.bf16.mxu0 0
    %64 = vmatpush1.bf16.msra.mxu0 0
    %65 = vmatprep.subr.bf16.mxu0 0
    %66 = vmatpush1.bf16.msra.mxu0 0
    %67 = vmatprep.subr.bf16.mxu0 0
    %68 = vmatpush1.bf16.msra.mxu0 0
    %69 = vmatprep.subr.bf16.mxu0 0
    %70 = vmatpush1.bf16.msra.mxu0 %v50
    %71 = vmatprep.subr.bf16.mxu0 0
    %72 = vmatpush1.bf16.msra.mxu0 %v49
    %73 = vmatprep.subr.bf16.mxu0 0
    %74 = vmatpush2.bf16.msra.mxu0 0
    %75 = vmatprep.subr.bf16.mxu0 0
    %76 = vmatpush2.bf16.msra.mxu0 0
    %77 = vmatprep.subr.bf16.mxu0 0
    %78 = vmatpush2.bf16.msra.mxu0 0
    %79 = vmatprep.subr.bf16.mxu0 0
    %80 = vmatpush2.bf16.msra.mxu0 0
    %81 = vmatprep.subr.bf16.mxu0 0
    %82 = vmatpush2.bf16.msra.mxu0 0
    %83 = vmatprep.subr.bf16.mxu0 0
    %84 = vmatpush2.bf16.msra.mxu0 0
    %85 = vmatprep.subr.bf16.mxu0 0
    %86 = vmatpush2.bf16.msra.mxu0 0
    %87 = vmatprep.subr.bf16.mxu0 0
    %88 = vmatpush2.bf16.msra.mxu0 0
    %89 = vmatprep.mubr.bf16.mxu0 0
    %90 = vmatmul.mubr.bf16.gmra.mxu0 %v55
    %v91 = vpop.f32.mrf.mxu0
    %v92 = vadd.f32 %v39, %v91
    %v93 = vpop.f32.mrf.mxu0
    %v94 = vpop.f32.mrf.mxu0
    %v95 = vpop.f32.mrf.mxu0
    %96 = vdwg.mxu0
    %v97 = vmax.f32 %v92, 0.0
    %v98 = vld [vmem:[#allocation2] sm:$0xff]
    %v99 = vpack.c.bf16 %v97, %v97
    %v100 = vld [vmem:[%s3] sm:$0xf]
    %v101 = vld [vmem:[%s3 + $0x4] sm:$0xf]
    %v102 = vld [vmem:[%s3 + $0x8] sm:$0xf]
    %v103 = vld [vmem:[%s3 + $0xc] sm:$0xf]
    %v104 = vld [vmem:[%s3 + $0x10] sm:$0xf]
    %v105 = vld [vmem:[%s3 + $0x14] sm:$0xf]
    %v106 = vld [vmem:[%s3 + $0x18] sm:$0xf]
    %v107 = vld [vmem:[%s3 + $0x1c] sm:$0xf]
    %v108 = vld [vmem:[%s3 + $0x20] sm:$0xf]
    %v109 = vld [vmem:[%s3 + $0x24] sm:$0xf]
    %v110 = vld [vmem:[%s3 + $0x28] sm:$0xf]
    %v111 = vld [vmem:[%s3 + $0x2c] sm:$0xf]
    %v112 = vld [vmem:[%s3 + $0x30] sm:$0xf]
    %v113 = vld [vmem:[%s3 + $0x34] sm:$0xf]
    %v114 = vld [vmem:[%s3 + $0x38] sm:$0xf]
    %v115 = vld [vmem:[%s3 + $0x3c] sm:$0xf]
    %v132 = vunpack.c.l.b16 %v100
    %v133 = vunpack.c.l.b16 %v101
    %v134 = vunpack.c.l.b16 %v102
    %v135 = vunpack.c.l.b16 %v103
    %v136 = vunpack.c.l.b16 %v104
    %v137 = vunpack.c.l.b16 %v105
    %v138 = vunpack.c.l.b16 %v106
    %v139 = vunpack.c.l.b16 %v107
    %v140 = vunpack.c.l.b16 %v108
    %v141 = vunpack.c.l.b16 %v109
    %v142 = vunpack.c.l.b16 %v110
    %v143 = vunpack.c.l.b16 %v111
    %v144 = vunpack.c.l.b16 %v112
    %v145 = vunpack.c.l.b16 %v113
    %v146 = vunpack.c.l.b16 %v114
    %v147 = vunpack.c.l.b16 %v115
    %v148 = vpack.c.b16 %v133, %v132
    %v149 = vpack.c.b16 %v135, %v134
    %v150 = vpack.c.b16 %v137, %v136
    %v151 = vpack.c.b16 %v139, %v138
    %v152 = vpack.c.b16 %v141, %v140
    %v153 = vpack.c.b16 %v143, %v142
    %v154 = vpack.c.b16 %v145, %v144
    %v155 = vpack.c.b16 %v147, %v146
    %164 = vmatprep.subr.bf16.mxu0 0
    %165 = vmatpush1.bf16.msra.mxu0 %v155
    %166 = vmatprep.subr.bf16.mxu0 0
    %167 = vmatpush1.bf16.msra.mxu0 %v154
    %168 = vmatprep.subr.bf16.mxu0 0
    %169 = vmatpush1.bf16.msra.mxu0 %v153
    %170 = vmatprep.subr.bf16.mxu0 0
    %171 = vmatpush1.bf16.msra.mxu0 %v152
    %172 = vmatprep.subr.bf16.mxu0 0
    %173 = vmatpush1.bf16.msra.mxu0 %v151
    %174 = vmatprep.subr.bf16.mxu0 0
    %175 = vmatpush1.bf16.msra.mxu0 %v150
    %176 = vmatprep.subr.bf16.mxu0 0
    %177 = vmatpush1.bf16.msra.mxu0 %v149
    %178 = vmatprep.subr.bf16.mxu0 0
    %179 = vmatpush1.bf16.msra.mxu0 %v148
    %180 = vmatprep.subr.bf16.mxu0 0
    %181 = vmatpush2.bf16.msra.mxu0 0
    %182 = vmatprep.subr.bf16.mxu0 0
    %183 = vmatpush2.bf16.msra.mxu0 0
    %184 = vmatprep.subr.bf16.mxu0 0
    %185 = vmatpush2.bf16.msra.mxu0 0
    %186 = vmatprep.subr.bf16.mxu0 0
    %187 = vmatpush2.bf16.msra.mxu0 0
    %188 = vmatprep.subr.bf16.mxu0 0
    %189 = vmatpush2.bf16.msra.mxu0 0
    %190 = vmatprep.subr.bf16.mxu0 0
    %191 = vmatpush2.bf16.msra.mxu0 0
    %192 = vmatprep.subr.bf16.mxu0 0
    %193 = vmatpush2.bf16.msra.mxu0 0
    %194 = vmatprep.subr.bf16.mxu0 0
    %195 = vmatpush2.bf16.msra.mxu0 0
    %196 = vmatprep.mubr.bf16.mxu0 0
    %197 = vmatmul.mubr.bf16.gmra.mxu0 %v99
    %v198 = vpop.f32.mrf.mxu0
    %v199 = vadd.f32 0.0, %v198
    %v200 = vpop.f32.mrf.mxu0
    %v201 = vpop.f32.mrf.mxu0
    %v202 = vpop.f32.mrf.mxu0
    %203 = vdwg.mxu0
    %v204 = vadd.f32 %v98, %v199
    %vm205 = vcmask 130048
    %206 = vst.msk [vmem:[#allocation2] sm:$0xff] %vm205, %v204
    // Predicated region
    $region26: #{tpu_custom_call.1} parent=1 // pred_check
      %p207 = pneg %p22
    $region27: #{tpu_custom_call.1} parent=1 // pred_check_branch
      %209 = sbr.rel (%p207) target = $region29
    $region28: #{tpu_custom_call.1} parent=1 // pred_region
      %v210 = vld [vmem:[#allocation2] sm:$0xff]
      %v211 = vld [vmem:[%s4] sm:$0x1]
      %v213 = vlaneseq
      %v214 = vshrl.u32 %v213, 7
      %v215 = vsub.s32 0, %v214
      %v216 = vrot.slane %v211, %v215
      %v218 = vadd.f32 %v210, %v216
      %219 = vst.msk [vmem:[#allocation3] sm:$0xff] %vm205, %v218
    $region29: #{tpu_custom_call.1} parent=1 // pred_fallthru
      _
    // Predicated region
    $region30: #{tpu_custom_call.1} parent=1 // pred_check
      _
    $region31: #{tpu_custom_call.1} parent=1 // pred_check_branch
      %221 = sbr.rel (0) target = $region33
    $region32: #{tpu_custom_call.1} parent=1 // pred_region
      %s223 = ssub.s32 128, 128
      %224 = vsyncadd [#allocation4], %s223
      %s226 = sshll.u32 [#allocation3], 4
      %s227 = int_to_ptr.vmem [resolvable:$true] %s226
      %229 = dma.vmem_to_hbm [thread:$0]  %s227, 128, %s5, [#allocation4]
    $region33: #{tpu_custom_call.1} parent=1 // pred_fallthru
      _
    // Predicated region
    $region34: #{tpu_custom_call.1} parent=1 // pred_check
      _
    $region35: #{tpu_custom_call.1} parent=1 // pred_check_branch
      %231 = sbr.rel (0) target = $region37
    $region36: #{tpu_custom_call.1} parent=1 // pred_region
      %232 = dma.done [#allocation4], 128
    $region37: #{tpu_custom_call.1} parent=1 // pred_fallthru
      _
    %233 = vsyncpa [#allocation4], 1

</llo_original>
